<compile_context>
chip_gen: v7x
topology: tpu7x:2x2x1
jax: 0.10.0
libtpu: 0.0.40
codegen_flags: <defaults>
</compile_context>

<pallas_src>
import numpy as np
import jax
import jax.numpy as jnp
from jax.experimental import pallas as pl
from jax.experimental.pallas import tpu as pltpu


def _leaky(v, slope=0.1):
    return jnp.where(v >= 0, v, slope * v)


def _round_up(v, m):
    return (v + m - 1) // m * m


def _edge_mask(NB, Hp, Wp, K):
    """[K*K, NB*Hp*Wp] 0/1 mask zeroing out-of-image conv taps.

    One row per tap (broadcast over channel sublanes inside the kernel);
    identical for both convs, so a single copy is passed to the kernel."""
    p = (K - 1) // 2
    hpwp = Hp * Wp
    n = NB * hpwp
    pos = np.arange(n) % hpwp
    ii = pos // Wp
    jj = pos % Wp
    mask = np.zeros((K * K, n), np.float32)
    for kh in range(K):
        for kw in range(K):
            dh, dw = kh - p, kw - p
            mask[kh * K + kw] = ((ii + dh >= 0) & (ii + dh < Hp) &
                                 (jj + dw >= 0) & (jj + dw < Wp))
    return mask


def _pick_nb(B, hpwp, target_lanes, max_lanes):
    """Smallest divisor of B giving >= target lanes per grid step (capped),
    keeping blocks 128-divisible whenever the grid has more than one step."""
    cands = [d for d in range(1, B + 1)
             if B % d == 0 and (B // d == 1 or (d * hpwp) % 128 == 0)]
    under = [d for d in cands if d * hpwp <= max_lanes] or cands[:1]
    for d in under:
        if d * hpwp >= target_lanes:
            return d
    return under[-1]


def make_down_kernel(Wp, N, Cin_p, Cout_p, Cmax, K, PADL, cdtype, slope=0.1):
    p = (K - 1) // 2
    taps = [(kh - p, kw - p) for kh in range(K) for kw in range(K)]

    def conv(scr, cp, m_ref, w_ref, b_ref):
        # im2col: K*K statically shifted windows stacked on sublanes; each
        # piece is tile-aligned (cp is a multiple of the sublane tile for the
        # compute dtype). Out-of-image taps are zeroed by one mask row per
        # tap, broadcast over the cp channel sublanes (center tap needs none).
        pieces = []
        for t, (dh, dw) in enumerate(taps):
            off = PADL + dh * Wp + dw
            win = scr[:cp, off:off + N]
            if (dh, dw) != (0, 0):
                win = win * m_ref[t:t + 1, :]
            pieces.append(win)
        patches = jnp.concatenate(pieces, axis=0)              # [K*K*cp, N]
        acc = jnp.dot(w_ref[...], patches.astype(jnp.bfloat16),
                      preferred_element_type=jnp.float32)      # [Cout_p, N]
        return _leaky(acc + b_ref[...], slope)

    def kernel(xg_ref, m_ref, w1_ref, b1_ref, w2_ref, b2_ref, o_ref, scr):
        # Flank-only zeroing: the interior [PADL, PADL+N) is fully overwritten
        # below, so only the halo columns touched by the shifted window reads
        # need (re)zeroing each step (safe under "parallel" grid sharding).
        zeros = jnp.zeros((Cmax, PADL), cdtype)
        scr[:, pl.ds(0, PADL)] = zeros
        scr[:, pl.ds(PADL + N, PADL)] = zeros

        # 2x2 average pool = 3 VPU adds over the pre-gathered quadrants
        # (the 0.25 scale is folded into w1 in the wrapper).
        pooled = (xg_ref[0] + xg_ref[1]) + (xg_ref[2] + xg_ref[3])   # [Cin_p, N]
        scr[:Cin_p, PADL:PADL + N] = pooled.astype(cdtype)

        # conv1 + bias + LeakyReLU (rows Cout..Cout_p-1 are exact zeros since
        # the padded weight rows / biases are zero -> no stale-VMEM hazard).
        h = conv(scr, Cin_p, m_ref, w1_ref, b1_ref)                  # [Cout_p, N]
        scr[:Cout_p, PADL:PADL + N] = h.astype(cdtype)

        # conv2 + bias + LeakyReLU
        o_ref[...] = conv(scr, Cout_p, m_ref, w2_ref, b2_ref)

    return kernel


def down_forward(x_nchw, w1, b1, w2, b2, K):
    """Forward pass of Down. x_nchw: [B, Cin, H, W] (PyTorch convention)."""
    B, Cin, H, W = x_nchw.shape
    Cout = w1.shape[0]
    assert H % 2 == 0 and W % 2 == 0, "avg_pool2d(2) needs even H, W"
    Hp, Wp = H // 2, W // 2
    HPWP = Hp * Wp
    p = (K - 1) // 2

    # ---- chip-dependent knobs (per perf review) ----------------------------
    try:
        kind = jax.devices()[0].device_kind.lower()
    except Exception:
        kind = ""
    is_v7 = ("v7" in kind) or ("7x" in kind)
    # v6e/v7x: bf16 VALU -> keep scratch + mask multiply in bf16 (halves
    # window-load bytes, removes the big f32->bf16 patch cast). v5e (and
    # unknown chips): stay f32, cast to bf16 only at the matmul operand.
    use_bf16 = is_v7 or ("v6" in kind)
    cdtype = jnp.bfloat16 if use_bf16 else jnp.float32
    esize = 2 if use_bf16 else 4
    # channel padding granularity = one sublane tile of the compute dtype so
    # every im2col piece / scratch store stays tile-aligned.
    cgran = 16 if use_bf16 else 8

    Cin_p = _round_up(Cin, cgran)
    Cout_p = _round_up(Cout, cgran)
    Cmax = max(Cin_p, Cout_p)

    # ---- block sizing: fold NB images onto the lane axis per grid step -----
    target_lanes = 512 if is_v7 else 1024       # amortize ~0.35us per step
    bytes_per_lane = (2 * 4 * Cin_p * 4         # xq block (f32, double-buffered)
                      + 2 * Cout_p * 4          # out block (f32, double-buffered)
                      + K * K * esize           # edge mask (resident)
                      + Cmax * esize            # shared pool/h scratch
                      + K * K * Cmax * esize    # im2col patches temporary
                      + 2 * Cout_p * 4)         # matmul acc / h temporaries
    block_budget = (28 if is_v7 else 72) * 1024 * 1024
    max_lanes = max(128, block_budget // bytes_per_lane // 128 * 128)
    NB = _pick_nb(B, HPWP, target_lanes, max_lanes)
    G = B // NB
    N = NB * HPWP
    PADL = max(128, _round_up(p * Wp + p, 128))   # lane halo >= max tap shift

    # ---- glue: pre-gather 2x2 pool quadrants; channels -> sublanes ---------
    xf = jnp.pad(x_nchw.astype(jnp.float32),
                 ((0, 0), (0, Cin_p - Cin), (0, 0), (0, 0)))
    xq = xf.reshape(B, Cin_p, Hp, 2, Wp, 2)
    xq = xq.transpose(3, 5, 1, 0, 2, 4).reshape(4, Cin_p, B * HPWP)

    # ---- weights: [Cout,Cin,K,K] -> [Cout_p, K*K*Cin_p] bf16, rows padded --
    def pack_w(w, cout, cout_p, cin, cin_p, scale=1.0):
        wf = w.astype(jnp.float32) * scale
        wf = jnp.pad(wf, ((0, cout_p - cout), (0, cin_p - cin), (0, 0), (0, 0)))
        return wf.transpose(0, 2, 3, 1).reshape(cout_p, K * K * cin_p).astype(
            jnp.bfloat16)

    w1f = pack_w(w1, Cout, Cout_p, Cin, Cin_p, scale=0.25)   # fold pool scale
    w2f = pack_w(w2, Cout, Cout_p, Cout, Cout_p)
    b1c = jnp.pad(b1.astype(jnp.float32), (0, Cout_p - Cout)).reshape(Cout_p, 1)
    b2c = jnp.pad(b2.astype(jnp.float32), (0, Cout_p - Cout)).reshape(Cout_p, 1)

    # one [K*K, N] edge mask shared by both convs
    m = jnp.asarray(_edge_mask(NB, Hp, Wp, K), dtype=cdtype)

    kernel = make_down_kernel(Wp, N, Cin_p, Cout_p, Cmax, K, PADL, cdtype)

    out_flat = pl.pallas_call(
        kernel,
        out_shape=jax.ShapeDtypeStruct((Cout_p, B * HPWP), jnp.float32),
        grid=(G,),
        in_specs=[
            pl.BlockSpec((4, Cin_p, N), lambda g: (0, 0, g)),
            pl.BlockSpec((K * K, N), lambda g: (0, 0)),
            pl.BlockSpec((Cout_p, K * K * Cin_p), lambda g: (0, 0)),
            pl.BlockSpec((Cout_p, 1), lambda g: (0, 0)),
            pl.BlockSpec((Cout_p, K * K * Cout_p), lambda g: (0, 0)),
            pl.BlockSpec((Cout_p, 1), lambda g: (0, 0)),
        ],
        out_specs=pl.BlockSpec((Cout_p, N), lambda g: (0, g)),
        scratch_shapes=[
            pltpu.VMEM((Cmax, PADL + N + PADL), cdtype),   # shared pool/h pad
        ],
        compiler_params=pltpu.CompilerParams(
            dimension_semantics=("parallel",),
            vmem_limit_bytes=(48 if is_v7 else 100) * 1024 * 1024),
    )(xq, m, w1f, b1c, w2f, b2c)

    # ---- glue: [Cout_p, B*Hp*Wp] -> NCHW, drop padded channels -------------
    out = out_flat.reshape(Cout_p, B, Hp, Wp).transpose(1, 0, 2, 3)
    return out[:, :Cout]


def down_reference(x, w1, b1, w2, b2, K):
    """Plain-JAX reference matching the PyTorch forward exactly."""
    p = (K - 1) // 2
    B, C, H, W = x.shape
    xp = x.reshape(B, C, H // 2, 2, W // 2, 2).mean(axis=(3, 5))

    def conv(inp, w, b):
        out = jax.lax.conv_general_dilated(
            inp, w, window_strides=(1, 1), padding=[(p, p), (p, p)],
            dimension_numbers=("NCHW", "OIHW", "NCHW"),
            precision=jax.lax.Precision.HIGHEST)
        return out + b.reshape(1, -1, 1, 1)

    h = _leaky(conv(xp, w1, b1))
    return _leaky(conv(h, w2, b2))


if __name__ == "__main__":
    B, Cin, Cout, H, W, K = 2, 4, 8, 16, 16, 3

    key = jax.random.PRNGKey(0)
    k1, k2, k3, k4, k5 = jax.random.split(key, 5)
    x = jax.random.normal(k1, (B, Cin, H, W), jnp.float32)
    w1 = jax.random.normal(k2, (Cout, Cin, K, K), jnp.float32) * 0.1
    b1 = jax.random.normal(k3, (Cout,), jnp.float32) * 0.1
    w2 = jax.random.normal(k4, (Cout, Cout, K, K), jnp.float32) * 0.1
    b2 = jax.random.normal(k5, (Cout,), jnp.float32) * 0.1

    out = jax.block_until_ready(down_forward(x, w1, b1, w2, b2, K))
    ref = down_reference(x, w1, b1, w2, b2, K)
    assert out.shape == ref.shape == (B, Cout, H // 2, W // 2), (out.shape, ref.shape)
    # bf16 matmul operands (f32 accumulation) vs the HIGHEST-precision f32
    # reference: allow 2e-2 absolute error (review flagged 1e-2 as tight).
    max_err = float(jnp.max(jnp.abs(out - ref)))
    assert max_err < 2e-2, f"max abs error {max_err}"
    print("KERNEL_OK")
</pallas_src>

<mosaic_0001>
module attributes {stable_mosaic.version = 11 : i64} {
  func.func @kernel(%arg0: i32, %arg1: memref<4x8x128xf32, #tpu.memory_space<vmem>>, %arg2: memref<9x128xf32, #tpu.memory_space<vmem>>, %arg3: memref<8x72xbf16, #tpu.memory_space<vmem>>, %arg4: memref<8x1xf32, #tpu.memory_space<vmem>>, %arg5: memref<8x72xbf16, #tpu.memory_space<vmem>>, %arg6: memref<8x1xf32, #tpu.memory_space<vmem>>, %arg7: memref<8x128xf32, #tpu.memory_space<vmem>>, %arg8: memref<8x384xf32, #tpu.memory_space<vmem>>) attributes {dimension_semantics = [#tpu.dimension_semantics<parallel>], iteration_bounds = array<i64: 1>, scalar_prefetch = 0 : i64, scratch_operands = 1 : i64, tpu.core_type = #tpu.core_type<tc>, window_params = [{transform_indices = @transform_0, window_bounds = array<i64: 4, 8, 128>}, {pipeline_mode = #tpu.pipeline_mode<synchronous>, transform_indices = @transform_1, window_bounds = array<i64: 9, 128>}, {pipeline_mode = #tpu.pipeline_mode<synchronous>, transform_indices = @transform_2, window_bounds = array<i64: 8, 72>}, {pipeline_mode = #tpu.pipeline_mode<synchronous>, transform_indices = @transform_3, window_bounds = array<i64: 8, 1>}, {pipeline_mode = #tpu.pipeline_mode<synchronous>, transform_indices = @transform_4, window_bounds = array<i64: 8, 72>}, {pipeline_mode = #tpu.pipeline_mode<synchronous>, transform_indices = @transform_5, window_bounds = array<i64: 8, 1>}, {transform_indices = @transform_6, window_bounds = array<i64: 8, 128>}]} {
    %cst = arith.constant 0.000000e+00 : f32
    %0 = vector.broadcast %cst : f32 to vector<8x128xf32>
    %c0 = arith.constant 0 : index
    %c0_0 = arith.constant 0 : index
    %1 = vector.load %arg8[%c0, %c0_0] : memref<8x384xf32, #tpu.memory_space<vmem>>, vector<8x128xf32>
    tpu.vector_store %arg8[%c0, %c0_0], %0 {strides = array<i32>} : memref<8x384xf32, #tpu.memory_space<vmem>>, vector<8x128xf32>,
    %c0_1 = arith.constant 0 : index
    %c256 = arith.constant 256 : index
    %2 = vector.load %arg8[%c0_1, %c256] : memref<8x384xf32, #tpu.memory_space<vmem>>, vector<8x128xf32>
    tpu.vector_store %arg8[%c0_1, %c256], %0 {strides = array<i32>} : memref<8x384xf32, #tpu.memory_space<vmem>>, vector<8x128xf32>,
    %c0_2 = arith.constant 0 : index
    %c0_3 = arith.constant 0 : index
    %c0_4 = arith.constant 0 : index
    %3 = vector.load %arg1[%c0_2, %c0_3, %c0_4] : memref<4x8x128xf32, #tpu.memory_space<vmem>>, vector<1x8x128xf32>
    %4 = vector.shape_cast %3 : vector<1x8x128xf32> to vector<8x128xf32>
    %c1 = arith.constant 1 : index
    %c0_5 = arith.constant 0 : index
    %c0_6 = arith.constant 0 : index
    %5 = vector.load %arg1[%c1, %c0_5, %c0_6] : memref<4x8x128xf32, #tpu.memory_space<vmem>>, vector<1x8x128xf32>
    %6 = vector.shape_cast %5 : vector<1x8x128xf32> to vector<8x128xf32>
    %7 = arith.addf %4, %6 : vector<8x128xf32>
    %c2 = arith.constant 2 : index
    %c0_7 = arith.constant 0 : index
    %c0_8 = arith.constant 0 : index
    %8 = vector.load %arg1[%c2, %c0_7, %c0_8] : memref<4x8x128xf32, #tpu.memory_space<vmem>>, vector<1x8x128xf32>
    %9 = vector.shape_cast %8 : vector<1x8x128xf32> to vector<8x128xf32>
    %c3 = arith.constant 3 : index
    %c0_9 = arith.constant 0 : index
    %c0_10 = arith.constant 0 : index
    %10 = vector.load %arg1[%c3, %c0_9, %c0_10] : memref<4x8x128xf32, #tpu.memory_space<vmem>>, vector<1x8x128xf32>
    %11 = vector.shape_cast %10 : vector<1x8x128xf32> to vector<8x128xf32>
    %12 = arith.addf %9, %11 : vector<8x128xf32>
    %13 = arith.addf %7, %12 : vector<8x128xf32>
    %c0_11 = arith.constant 0 : index
    %c128 = arith.constant 128 : index
    %14 = vector.load %arg8[%c0_11, %c128] : memref<8x384xf32, #tpu.memory_space<vmem>>, vector<8x128xf32>
    tpu.vector_store %arg8[%c0_11, %c128], %13 {strides = array<i32>} : memref<8x384xf32, #tpu.memory_space<vmem>>, vector<8x128xf32>,
    %c0_12 = arith.constant 0 : index
    %c119 = arith.constant 119 : index
    %15 = vector.load %arg8[%c0_12, %c119] : memref<8x384xf32, #tpu.memory_space<vmem>>, vector<8x128xf32>
    %c0_13 = arith.constant 0 : index
    %c0_14 = arith.constant 0 : index
    %16 = vector.load %arg2[%c0_13, %c0_14] : memref<9x128xf32, #tpu.memory_space<vmem>>, vector<1x128xf32>
    %17 = vector.broadcast %16 : vector<1x128xf32> to vector<8x128xf32>
    %18 = arith.mulf %15, %17 : vector<8x128xf32>
    %c0_15 = arith.constant 0 : index
    %c120 = arith.constant 120 : index
    %19 = vector.load %arg8[%c0_15, %c120] : memref<8x384xf32, #tpu.memory_space<vmem>>, vector<8x128xf32>
    %c1_16 = arith.constant 1 : index
    %c0_17 = arith.constant 0 : index
    %20 = vector.load %arg2[%c1_16, %c0_17] : memref<9x128xf32, #tpu.memory_space<vmem>>, vector<1x128xf32>
    %21 = vector.broadcast %20 : vector<1x128xf32> to vector<8x128xf32>
    %22 = arith.mulf %19, %21 : vector<8x128xf32>
    %c0_18 = arith.constant 0 : index
    %c121 = arith.constant 121 : index
    %23 = vector.load %arg8[%c0_18, %c121] : memref<8x384xf32, #tpu.memory_space<vmem>>, vector<8x128xf32>
    %c2_19 = arith.constant 2 : index
    %c0_20 = arith.constant 0 : index
    %24 = vector.load %arg2[%c2_19, %c0_20] : memref<9x128xf32, #tpu.memory_space<vmem>>, vector<1x128xf32>
    %25 = vector.broadcast %24 : vector<1x128xf32> to vector<8x128xf32>
    %26 = arith.mulf %23, %25 : vector<8x128xf32>
    %c0_21 = arith.constant 0 : index
    %c127 = arith.constant 127 : index
    %27 = vector.load %arg8[%c0_21, %c127] : memref<8x384xf32, #tpu.memory_space<vmem>>, vector<8x128xf32>
    %c3_22 = arith.constant 3 : index
    %c0_23 = arith.constant 0 : index
    %28 = vector.load %arg2[%c3_22, %c0_23] : memref<9x128xf32, #tpu.memory_space<vmem>>, vector<1x128xf32>
    %29 = vector.broadcast %28 : vector<1x128xf32> to vector<8x128xf32>
    %30 = arith.mulf %27, %29 : vector<8x128xf32>
    %c0_24 = arith.constant 0 : index
    %c128_25 = arith.constant 128 : index
    %31 = vector.load %arg8[%c0_24, %c128_25] : memref<8x384xf32, #tpu.memory_space<vmem>>, vector<8x128xf32>
    %c0_26 = arith.constant 0 : index
    %c129 = arith.constant 129 : index
    %32 = vector.load %arg8[%c0_26, %c129] : memref<8x384xf32, #tpu.memory_space<vmem>>, vector<8x128xf32>
    %c5 = arith.constant 5 : index
    %c0_27 = arith.constant 0 : index
    %33 = vector.load %arg2[%c5, %c0_27] : memref<9x128xf32, #tpu.memory_space<vmem>>, vector<1x128xf32>
    %34 = vector.broadcast %33 : vector<1x128xf32> to vector<8x128xf32>
    %35 = arith.mulf %32, %34 : vector<8x128xf32>
    %c0_28 = arith.constant 0 : index
    %c135 = arith.constant 135 : index
    %36 = vector.load %arg8[%c0_28, %c135] : memref<8x384xf32, #tpu.memory_space<vmem>>, vector<8x128xf32>
    %c6 = arith.constant 6 : index
    %c0_29 = arith.constant 0 : index
    %37 = vector.load %arg2[%c6, %c0_29] : memref<9x128xf32, #tpu.memory_space<vmem>>, vector<1x128xf32>
    %38 = vector.broadcast %37 : vector<1x128xf32> to vector<8x128xf32>
    %39 = arith.mulf %36, %38 : vector<8x128xf32>
    %c0_30 = arith.constant 0 : index
    %c136 = arith.constant 136 : index
    %40 = vector.load %arg8[%c0_30, %c136] : memref<8x384xf32, #tpu.memory_space<vmem>>, vector<8x128xf32>
    %c7 = arith.constant 7 : index
    %c0_31 = arith.constant 0 : index
    %41 = vector.load %arg2[%c7, %c0_31] : memref<9x128xf32, #tpu.memory_space<vmem>>, vector<1x128xf32>
    %42 = vector.broadcast %41 : vector<1x128xf32> to vector<8x128xf32>
    %43 = arith.mulf %40, %42 : vector<8x128xf32>
    %c0_32 = arith.constant 0 : index
    %c137 = arith.constant 137 : index
    %44 = vector.load %arg8[%c0_32, %c137] : memref<8x384xf32, #tpu.memory_space<vmem>>, vector<8x128xf32>
    %c8 = arith.constant 8 : index
    %c0_33 = arith.constant 0 : index
    %45 = vector.load %arg2[%c8, %c0_33] : memref<9x128xf32, #tpu.memory_space<vmem>>, vector<1x128xf32>
    %46 = vector.broadcast %45 : vector<1x128xf32> to vector<8x128xf32>
    %47 = arith.mulf %44, %46 : vector<8x128xf32>
    %48 = tpu.concatenate %18, %22, %26, %30, %31, %35, %39, %43, %47 in 0 : vector<8x128xf32>, vector<8x128xf32>, vector<8x128xf32>, vector<8x128xf32>, vector<8x128xf32>, vector<8x128xf32>, vector<8x128xf32>, vector<8x128xf32>, vector<8x128xf32> -> vector<72x128xf32>
    %c0_34 = arith.constant 0 : index
    %c0_35 = arith.constant 0 : index
    %49 = vector.load %arg3[%c0_34, %c0_35] : memref<8x72xbf16, #tpu.memory_space<vmem>>, vector<8x72xbf16>
    %50 = arith.truncf %48 : vector<72x128xf32> to vector<72x128xbf16>
    %cst_36 = arith.constant dense<0.000000e+00> : vector<8x128xf32>
    %51 = tpu.matmul %49, %50, %cst_36 {dimension_numbers = #tpu.dot_dimension_numbers<[1], [0], [0], [1], [0, 0, 1, 1], [], []>} : vector<8x72xbf16>, vector<72x128xbf16>, vector<8x128xf32> -> vector<8x128xf32>
    %c0_37 = arith.constant 0 : index
    %c0_38 = arith.constant 0 : index
    %52 = vector.load %arg4[%c0_37, %c0_38] : memref<8x1xf32, #tpu.memory_space<vmem>>, vector<8x1xf32>
    %53 = vector.broadcast %52 : vector<8x1xf32> to vector<8x128xf32>
    %54 = arith.addf %51, %53 : vector<8x128xf32>
    %cst_39 = arith.constant 0.000000e+00 : f32
    %55 = vector.broadcast %cst_39 : f32 to vector<8x128xf32>
    %56 = arith.cmpf oge, %54, %55 : vector<8x128xf32>
    %cst_40 = arith.constant 1.000000e-01 : f32
    %57 = vector.broadcast %cst_40 : f32 to vector<8x128xf32>
    %58 = arith.mulf %57, %54 : vector<8x128xf32>
    %59 = arith.select %56, %54, %58 : vector<8x128xi1>, vector<8x128xf32>
    %c0_41 = arith.constant 0 : index
    %c128_42 = arith.constant 128 : index
    %60 = vector.load %arg8[%c0_41, %c128_42] : memref<8x384xf32, #tpu.memory_space<vmem>>, vector<8x128xf32>
    tpu.vector_store %arg8[%c0_41, %c128_42], %59 {strides = array<i32>} : memref<8x384xf32, #tpu.memory_space<vmem>>, vector<8x128xf32>,
    %c0_43 = arith.constant 0 : index
    %c119_44 = arith.constant 119 : index
    %61 = vector.load %arg8[%c0_43, %c119_44] : memref<8x384xf32, #tpu.memory_space<vmem>>, vector<8x128xf32>
    %c0_45 = arith.constant 0 : index
    %c0_46 = arith.constant 0 : index
    %62 = vector.load %arg2[%c0_45, %c0_46] : memref<9x128xf32, #tpu.memory_space<vmem>>, vector<1x128xf32>
    %63 = vector.broadcast %62 : vector<1x128xf32> to vector<8x128xf32>
    %64 = arith.mulf %61, %63 : vector<8x128xf32>
    %c0_47 = arith.constant 0 : index
    %c120_48 = arith.constant 120 : index
    %65 = vector.load %arg8[%c0_47, %c120_48] : memref<8x384xf32, #tpu.memory_space<vmem>>, vector<8x128xf32>
    %c1_49 = arith.constant 1 : index
    %c0_50 = arith.constant 0 : index
    %66 = vector.load %arg2[%c1_49, %c0_50] : memref<9x128xf32, #tpu.memory_space<vmem>>, vector<1x128xf32>
    %67 = vector.broadcast %66 : vector<1x128xf32> to vector<8x128xf32>
    %68 = arith.mulf %65, %67 : vector<8x128xf32>
    %c0_51 = arith.constant 0 : index
    %c121_52 = arith.constant 121 : index
    %69 = vector.load %arg8[%c0_51, %c121_52] : memref<8x384xf32, #tpu.memory_space<vmem>>, vector<8x128xf32>
    %c2_53 = arith.constant 2 : index
    %c0_54 = arith.constant 0 : index
    %70 = vector.load %arg2[%c2_53, %c0_54] : memref<9x128xf32, #tpu.memory_space<vmem>>, vector<1x128xf32>
    %71 = vector.broadcast %70 : vector<1x128xf32> to vector<8x128xf32>
    %72 = arith.mulf %69, %71 : vector<8x128xf32>
    %c0_55 = arith.constant 0 : index
    %c127_56 = arith.constant 127 : index
    %73 = vector.load %arg8[%c0_55, %c127_56] : memref<8x384xf32, #tpu.memory_space<vmem>>, vector<8x128xf32>
    %c3_57 = arith.constant 3 : index
    %c0_58 = arith.constant 0 : index
    %74 = vector.load %arg2[%c3_57, %c0_58] : memref<9x128xf32, #tpu.memory_space<vmem>>, vector<1x128xf32>
    %75 = vector.broadcast %74 : vector<1x128xf32> to vector<8x128xf32>
    %76 = arith.mulf %73, %75 : vector<8x128xf32>
    %c0_59 = arith.constant 0 : index
    %c128_60 = arith.constant 128 : index
    %77 = vector.load %arg8[%c0_59, %c128_60] : memref<8x384xf32, #tpu.memory_space<vmem>>, vector<8x128xf32>
    %c0_61 = arith.constant 0 : index
    %c129_62 = arith.constant 129 : index
    %78 = vector.load %arg8[%c0_61, %c129_62] : memref<8x384xf32, #tpu.memory_space<vmem>>, vector<8x128xf32>
    %c5_63 = arith.constant 5 : index
    %c0_64 = arith.constant 0 : index
    %79 = vector.load %arg2[%c5_63, %c0_64] : memref<9x128xf32, #tpu.memory_space<vmem>>, vector<1x128xf32>
    %80 = vector.broadcast %79 : vector<1x128xf32> to vector<8x128xf32>
    %81 = arith.mulf %78, %80 : vector<8x128xf32>
    %c0_65 = arith.constant 0 : index
    %c135_66 = arith.constant 135 : index
    %82 = vector.load %arg8[%c0_65, %c135_66] : memref<8x384xf32, #tpu.memory_space<vmem>>, vector<8x128xf32>
    %c6_67 = arith.constant 6 : index
    %c0_68 = arith.constant 0 : index
    %83 = vector.load %arg2[%c6_67, %c0_68] : memref<9x128xf32, #tpu.memory_space<vmem>>, vector<1x128xf32>
    %84 = vector.broadcast %83 : vector<1x128xf32> to vector<8x128xf32>
    %85 = arith.mulf %82, %84 : vector<8x128xf32>
    %c0_69 = arith.constant 0 : index
    %c136_70 = arith.constant 136 : index
    %86 = vector.load %arg8[%c0_69, %c136_70] : memref<8x384xf32, #tpu.memory_space<vmem>>, vector<8x128xf32>
    %c7_71 = arith.constant 7 : index
    %c0_72 = arith.constant 0 : index
    %87 = vector.load %arg2[%c7_71, %c0_72] : memref<9x128xf32, #tpu.memory_space<vmem>>, vector<1x128xf32>
    %88 = vector.broadcast %87 : vector<1x128xf32> to vector<8x128xf32>
    %89 = arith.mulf %86, %88 : vector<8x128xf32>
    %c0_73 = arith.constant 0 : index
    %c137_74 = arith.constant 137 : index
    %90 = vector.load %arg8[%c0_73, %c137_74] : memref<8x384xf32, #tpu.memory_space<vmem>>, vector<8x128xf32>
    %c8_75 = arith.constant 8 : index
    %c0_76 = arith.constant 0 : index
    %91 = vector.load %arg2[%c8_75, %c0_76] : memref<9x128xf32, #tpu.memory_space<vmem>>, vector<1x128xf32>
    %92 = vector.broadcast %91 : vector<1x128xf32> to vector<8x128xf32>
    %93 = arith.mulf %90, %92 : vector<8x128xf32>
    %94 = tpu.concatenate %64, %68, %72, %76, %77, %81, %85, %89, %93 in 0 : vector<8x128xf32>, vector<8x128xf32>, vector<8x128xf32>, vector<8x128xf32>, vector<8x128xf32>, vector<8x128xf32>, vector<8x128xf32>, vector<8x128xf32>, vector<8x128xf32> -> vector<72x128xf32>
    %c0_77 = arith.constant 0 : index
    %c0_78 = arith.constant 0 : index
    %95 = vector.load %arg5[%c0_77, %c0_78] : memref<8x72xbf16, #tpu.memory_space<vmem>>, vector<8x72xbf16>
    %96 = arith.truncf %94 : vector<72x128xf32> to vector<72x128xbf16>
    %cst_79 = arith.constant dense<0.000000e+00> : vector<8x128xf32>
    %97 = tpu.matmul %95, %96, %cst_79 {dimension_numbers = #tpu.dot_dimension_numbers<[1], [0], [0], [1], [0, 0, 1, 1], [], []>} : vector<8x72xbf16>, vector<72x128xbf16>, vector<8x128xf32> -> vector<8x128xf32>
    %c0_80 = arith.constant 0 : index
    %c0_81 = arith.constant 0 : index
    %98 = vector.load %arg6[%c0_80, %c0_81] : memref<8x1xf32, #tpu.memory_space<vmem>>, vector<8x1xf32>
    %99 = vector.broadcast %98 : vector<8x1xf32> to vector<8x128xf32>
    %100 = arith.addf %97, %99 : vector<8x128xf32>
    %cst_82 = arith.constant 0.000000e+00 : f32
    %101 = vector.broadcast %cst_82 : f32 to vector<8x128xf32>
    %102 = arith.cmpf oge, %100, %101 : vector<8x128xf32>
    %cst_83 = arith.constant 1.000000e-01 : f32
    %103 = vector.broadcast %cst_83 : f32 to vector<8x128xf32>
    %104 = arith.mulf %103, %100 : vector<8x128xf32>
    %105 = arith.select %102, %100, %104 : vector<8x128xi1>, vector<8x128xf32>
    %c0_84 = arith.constant 0 : index
    %c0_85 = arith.constant 0 : index
    %106 = vector.load %arg7[%c0_84, %c0_85] : memref<8x128xf32, #tpu.memory_space<vmem>>, vector<8x128xf32>
    tpu.vector_store %arg7[%c0_84, %c0_85], %105 {strides = array<i32>} : memref<8x128xf32, #tpu.memory_space<vmem>>, vector<8x128xf32>,
    return
  }
  func.func @transform_0(%arg0: i32) -> (i32, i32, i32) {
    %c0_i32 = arith.constant 0 : i32
    %c0_i32_0 = arith.constant 0 : i32
    %c0_i32_1 = arith.constant 0 : i32
    return %c0_i32, %c0_i32_0, %arg0 : i32, i32, i32
  }
  func.func @transform_1(%arg0: i32) -> (i32, i32) {
    %c0_i32 = arith.constant 0 : i32
    %c0_i32_0 = arith.constant 0 : i32
    %c0_i32_1 = arith.constant 0 : i32
    return %c0_i32, %c0_i32_0 : i32, i32
  }
  func.func @transform_2(%arg0: i32) -> (i32, i32) {
    %c0_i32 = arith.constant 0 : i32
    %c0_i32_0 = arith.constant 0 : i32
    %c0_i32_1 = arith.constant 0 : i32
    return %c0_i32, %c0_i32_0 : i32, i32
  }
  func.func @transform_3(%arg0: i32) -> (i32, i32) {
    %c0_i32 = arith.constant 0 : i32
    %c0_i32_0 = arith.constant 0 : i32
    %c0_i32_1 = arith.constant 0 : i32
    return %c0_i32, %c0_i32_0 : i32, i32
  }
  func.func @transform_4(%arg0: i32) -> (i32, i32) {
    %c0_i32 = arith.constant 0 : i32
    %c0_i32_0 = arith.constant 0 : i32
    %c0_i32_1 = arith.constant 0 : i32
    return %c0_i32, %c0_i32_0 : i32, i32
  }
  func.func @transform_5(%arg0: i32) -> (i32, i32) {
    %c0_i32 = arith.constant 0 : i32
    %c0_i32_0 = arith.constant 0 : i32
    %c0_i32_1 = arith.constant 0 : i32
    return %c0_i32, %c0_i32_0 : i32, i32
  }
  func.func @transform_6(%arg0: i32) -> (i32, i32) {
    %c0_i32 = arith.constant 0 : i32
    %c0_i32_0 = arith.constant 0 : i32
    return %c0_i32, %arg0 : i32, i32
  }
}

</mosaic_0001>

<llo_original>
// kernel: tpu_custom_call.1
$region0: #{tpu_custom_call.1}
  #allocation0 [shape = 'u32[]', space=smem, size = 0x4, offset = 0x4, fixed_abs, tag = 'smem constant byte address 0x4 - core index']
  #allocation1 [shape = 'u32[144,128]{1,0:T(1,128)}', space=vmem, size = 0x12000, scoped, tag = 'internal scratch']
  #allocation2 [shape = 'f32[8,384]{1,0:T(8,128)}', space=vmem, size = 0x3000, scoped, tag = 'scratch operand']
  %s0 = inlined_call_operand.hbm [shape: f32[4,8,128], index: 0, kind: input, shape index: {}]
  %s1 = inlined_call_operand.hbm [shape: f32[9,128], index: 1, kind: input, shape index: {}]
  %s2 = inlined_call_operand.hbm [shape: bf16[8,72], index: 2, kind: input, shape index: {}]
  %s3 = inlined_call_operand.hbm [shape: f32[8,1], index: 3, kind: input, shape index: {}]
  %s4 = inlined_call_operand.hbm [shape: bf16[8,72], index: 4, kind: input, shape index: {}]
  %s5 = inlined_call_operand.hbm [shape: f32[8,1], index: 5, kind: input, shape index: {}]
  %s6 = inlined_call_operand.hbm [shape: f32[8,128], index: 6, kind: output, shape index: {}]
  %s7 = sld [smem:[#allocation0]]
  $region58: #{tpu_custom_call.1} parent=0
    _
  %s9 = ssub.s32 1, %s7
  %s10 = scalar_select 0, %s9, %s7
  $region1: #{tpu_custom_call.1} parent=0
    #allocation3 [shape = 'u8[16384]{0}', space=vmem, size = 0x4000, scoped, tag = 'input window, operand 0, single buffered']
    #allocation4 [shape = 's32[1]{0}', space=sflag, size = 0x4, scoped, tag = 'scoped memory for tpu_custom_call.1']
    #allocation5 [shape = 's32[1]{0}', space=sflag, size = 0x4, scoped, tag = 'scoped memory for tpu_custom_call.1']
    #allocation6 [shape = 'u8[8192]{0}', space=vmem, size = 0x2000, scoped, tag = 'input window, operand 1, single buffered']
    #allocation7 [shape = 's32[1]{0}', space=sflag, size = 0x4, scoped, tag = 'scoped memory for tpu_custom_call.1']
    #allocation8 [shape = 'u8[2048]{0}', space=vmem, size = 0x800, scoped, tag = 'input window, operand 2, single buffered']
    #allocation9 [shape = 'u8[4096]{0}', space=vmem, size = 0x1000, scoped, tag = 'input window, operand 3, single buffered']
    #allocation10 [shape = 's32[1]{0}', space=sflag, size = 0x4, scoped, tag = 'scoped memory for tpu_custom_call.1']
    #allocation11 [shape = 'u8[2048]{0}', space=vmem, size = 0x800, scoped, tag = 'input window, operand 4, single buffered']
    #allocation12 [shape = 'u8[4096]{0}', space=vmem, size = 0x1000, scoped, tag = 'input window, operand 5, single buffered']
    #allocation13 [shape = 's32[1]{0}', space=sflag, size = 0x4, scoped, tag = 'scoped memory for tpu_custom_call.1']
    #allocation14 [shape = 'u8[4096]{0}', space=vmem, size = 0x1000, scoped, tag = 'output window, operand 0, single buffered']
    %11 = vsyncpa [#allocation4], 0
    %12 = vsyncpa [#allocation7], 0
    %13 = vsyncpa [#allocation10], 0
    %14 = vsyncpa [#allocation13], 0
    %15 = vsyncpa [#allocation5], 0
    // Predicated region
    $region2: #{tpu_custom_call.1} parent=1 // pred_check
      _
    $region3: #{tpu_custom_call.1} parent=1 // pred_check_branch
      %17 = sbr.rel (0) target = $region5
    $region4: #{tpu_custom_call.1} parent=1 // pred_region
      %s19 = ssub.s32 512, 512
      %20 = vsyncadd [#allocation4], %s19
      %s21 = sshll.u32 [#allocation3], 4
      %s22 = int_to_ptr.vmem [resolvable:$true] %s21
      %27 = dma.hbm_to_vmem [thread:$0]  %s0, 512, %s22, [#allocation4], 128, 128, 8
    $region5: #{tpu_custom_call.1} parent=1 // pred_fallthru
      _
    // Predicated region
    $region6: #{tpu_custom_call.1} parent=1 // pred_check
      _
    $region7: #{tpu_custom_call.1} parent=1 // pred_check_branch
      %29 = sbr.rel (0) target = $region9
    $region8: #{tpu_custom_call.1} parent=1 // pred_region
      %s31 = ssub.s32 256, 256
      %32 = vsyncadd [#allocation7], %s31
      %s33 = sshll.u32 [#allocation6], 4
      %s34 = int_to_ptr.vmem [resolvable:$true] %s33
      %39 = dma.hbm_to_vmem [thread:$0]  %s1, 256, %s34, [#allocation7], 128, 128, 8
    $region9: #{tpu_custom_call.1} parent=1 // pred_fallthru
      _
    // Predicated region
    $region10: #{tpu_custom_call.1} parent=1 // pred_check
      _
    $region11: #{tpu_custom_call.1} parent=1 // pred_check_branch
      %41 = sbr.rel (0) target = $region13
    $region12: #{tpu_custom_call.1} parent=1 // pred_region
      %s43 = ssub.s32 64, 64
      %44 = vsyncadd [#allocation7], %s43
      %s46 = sshll.u32 [#allocation8], 4
      %s47 = int_to_ptr.vmem [resolvable:$true] %s46
      %49 = dma.hbm_to_vmem [thread:$0]  %s2, 64, %s47, [#allocation7]
    $region13: #{tpu_custom_call.1} parent=1 // pred_fallthru
      _
    // Predicated region
    $region14: #{tpu_custom_call.1} parent=1 // pred_check
      _
    $region15: #{tpu_custom_call.1} parent=1 // pred_check_branch
      %51 = sbr.rel (0) target = $region17
    $region16: #{tpu_custom_call.1} parent=1 // pred_region
      %s53 = ssub.s32 128, 128
      %54 = vsyncadd [#allocation10], %s53
      %s56 = sshll.u32 [#allocation9], 4
      %s57 = int_to_ptr.vmem [resolvable:$true] %s56
      %59 = dma.hbm_to_vmem [thread:$0]  %s3, 128, %s57, [#allocation10]
    $region17: #{tpu_custom_call.1} parent=1 // pred_fallthru
      _
    // Predicated region
    $region18: #{tpu_custom_call.1} parent=1 // pred_check
      _
    $region19: #{tpu_custom_call.1} parent=1 // pred_check_branch
      %61 = sbr.rel (0) target = $region21
    $region20: #{tpu_custom_call.1} parent=1 // pred_region
      %s63 = ssub.s32 64, 64
      %64 = vsyncadd [#allocation10], %s63
      %s66 = sshll.u32 [#allocation11], 4
      %s67 = int_to_ptr.vmem [resolvable:$true] %s66
      %69 = dma.hbm_to_vmem [thread:$0]  %s4, 64, %s67, [#allocation10]
    $region21: #{tpu_custom_call.1} parent=1 // pred_fallthru
      _
    // Predicated region
    $region22: #{tpu_custom_call.1} parent=1 // pred_check
      _
    $region23: #{tpu_custom_call.1} parent=1 // pred_check_branch
      %71 = sbr.rel (0) target = $region25
    $region24: #{tpu_custom_call.1} parent=1 // pred_region
      %s73 = ssub.s32 128, 128
      %74 = vsyncadd [#allocation13], %s73
      %s76 = sshll.u32 [#allocation12], 4
      %s77 = int_to_ptr.vmem [resolvable:$true] %s76
      %79 = dma.hbm_to_vmem [thread:$0]  %s5, 128, %s77, [#allocation13]
    $region25: #{tpu_custom_call.1} parent=1 // pred_fallthru
      _
    // Predicated region
    $region26: #{tpu_custom_call.1} parent=1 // pred_check
      _
    $region27: #{tpu_custom_call.1} parent=1 // pred_check_branch
      %81 = sbr.rel (0) target = $region29
    $region28: #{tpu_custom_call.1} parent=1 // pred_region
      %82 = dma.done [#allocation4], 512
    $region29: #{tpu_custom_call.1} parent=1 // pred_fallthru
      _
    // Predicated region
    $region30: #{tpu_custom_call.1} parent=1 // pred_check
      _
    $region31: #{tpu_custom_call.1} parent=1 // pred_check_branch
      %84 = sbr.rel (0) target = $region33
    $region32: #{tpu_custom_call.1} parent=1 // pred_region
      %85 = dma.done [#allocation7], 256
    $region33: #{tpu_custom_call.1} parent=1 // pred_fallthru
      _
    // Predicated region
    $region34: #{tpu_custom_call.1} parent=1 // pred_check
      _
    $region35: #{tpu_custom_call.1} parent=1 // pred_check_branch
      %87 = sbr.rel (0) target = $region37
    $region36: #{tpu_custom_call.1} parent=1 // pred_region
      %88 = dma.done [#allocation7], 64
    $region37: #{tpu_custom_call.1} parent=1 // pred_fallthru
      _
    // Predicated region
    $region38: #{tpu_custom_call.1} parent=1 // pred_check
      _
    $region39: #{tpu_custom_call.1} parent=1 // pred_check_branch
      %90 = sbr.rel (0) target = $region41
    $region40: #{tpu_custom_call.1} parent=1 // pred_region
      %91 = dma.done [#allocation10], 128
    $region41: #{tpu_custom_call.1} parent=1 // pred_fallthru
      _
    // Predicated region
    $region42: #{tpu_custom_call.1} parent=1 // pred_check
      _
    $region43: #{tpu_custom_call.1} parent=1 // pred_check_branch
      %93 = sbr.rel (0) target = $region45
    $region44: #{tpu_custom_call.1} parent=1 // pred_region
      %94 = dma.done [#allocation10], 64
    $region45: #{tpu_custom_call.1} parent=1 // pred_fallthru
      _
    // Predicated region
    $region46: #{tpu_custom_call.1} parent=1 // pred_check
      _
    $region47: #{tpu_custom_call.1} parent=1 // pred_check_branch
      %96 = sbr.rel (0) target = $region49
    $region48: #{tpu_custom_call.1} parent=1 // pred_region
      %97 = dma.done [#allocation13], 128
    $region49: #{tpu_custom_call.1} parent=1 // pred_fallthru
      _
    %99 = vst [vmem:[#allocation2] sm:$0xff] 0.0
    %100 = vst [vmem:[#allocation2 + $0x10] sm:$0xff] 0.0
    %v101 = vld [vmem:[#allocation3] sm:$0xff]
    %s102 = scalar_lea.vmem [#allocation3], 8
    %v103 = vld [vmem:[%s102] sm:$0xff]
    %v104 = vadd.f32 %v101, %v103
    %s105 = scalar_lea.vmem [#allocation3], 16
    %v106 = vld [vmem:[%s105] sm:$0xff]
    %s107 = scalar_lea.vmem [#allocation3], 24
    %v108 = vld [vmem:[%s107] sm:$0xff]
    %v109 = vadd.f32 %v106, %v108
    %v110 = vadd.f32 %v104, %v109
    %111 = vst [vmem:[#allocation2 + $0x8] sm:$0xff] %v110
    %v112 = vld [vmem:[#allocation2] sm:$0xff]
    %v113 = vld [vmem:[#allocation2 + $0x8] sm:$0xff]
    %v114 = vld [vmem:[#allocation6] sm:$0x1]
    %v115 = vlaneseq
    %v116 = vshrl.u32 %v115, 7
    %v117 = vsub.s32 0, %v116
    %v118 = vrot.slane %v114, %v117
    %120 = vrot.lane.b32.xlu0 %v118, 119
    %v121 = vpop.permute.xlu0 %120
    %v123 = vmul.f32 %v112, %v121
    %v124 = vmul.f32 %v113, %v121
    %v125 = vld [vmem:[#allocation6 + $0x1] sm:$0x1]
    %v126 = vlaneseq
    %v127 = vshrl.u32 %v126, 7
    %v128 = vsub.s32 0, %v127
    %v129 = vrot.slane %v125, %v128
    %131 = vrot.lane.b32.xlu0 %v129, 120
    %v132 = vpop.permute.xlu0 %131
    %v134 = vmul.f32 %v112, %v132
    %v135 = vmul.f32 %v113, %v132
    %v136 = vld [vmem:[#allocation6 + $0x2] sm:$0x1]
    %v137 = vlaneseq
    %v138 = vshrl.u32 %v137, 7
    %v139 = vsub.s32 0, %v138
    %v140 = vrot.slane %v136, %v139
    %142 = vrot.lane.b32.xlu0 %v140, 121
    %v143 = vpop.permute.xlu0 %142
    %v145 = vmul.f32 %v112, %v143
    %v146 = vmul.f32 %v113, %v143
    %v147 = vld [vmem:[#allocation6 + $0x3] sm:$0x1]
    %v148 = vlaneseq
    %v149 = vshrl.u32 %v148, 7
    %v150 = vsub.s32 0, %v149
    %v151 = vrot.slane %v147, %v150
    %153 = vrot.lane.b32.xlu0 %v151, 127
    %v154 = vpop.permute.xlu0 %153
    %v156 = vmul.f32 %v112, %v154
    %v157 = vmul.f32 %v113, %v154
    %v158 = vld [vmem:[#allocation2 + $0x8] sm:$0xff]
    %v159 = vld [vmem:[#allocation2 + $0x10] sm:$0xff]
    %v160 = vld [vmem:[#allocation6 + $0x5] sm:$0x1]
    %v161 = vlaneseq
    %v162 = vshrl.u32 %v161, 7
    %v163 = vsub.s32 0, %v162
    %v164 = vrot.slane %v160, %v163
    %166 = vrot.lane.b32.xlu0 %v164, 1
    %v167 = vpop.permute.xlu0 %166
    %v169 = vmul.f32 %v158, %v167
    %v170 = vmul.f32 %v159, %v167
    %v171 = vld [vmem:[#allocation6 + $0x6] sm:$0x1]
    %v172 = vlaneseq
    %v173 = vshrl.u32 %v172, 7
    %v174 = vsub.s32 0, %v173
    %v175 = vrot.slane %v171, %v174
    %177 = vrot.lane.b32.xlu0 %v175, 7
    %v178 = vpop.permute.xlu0 %177
    %v180 = vmul.f32 %v158, %v178
    %v181 = vmul.f32 %v159, %v178
    %v182 = vld [vmem:[#allocation6 + $0x7] sm:$0x1]
    %v183 = vlaneseq
    %v184 = vshrl.u32 %v183, 7
    %v185 = vsub.s32 0, %v184
    %v186 = vrot.slane %v182, %v185
    %188 = vrot.lane.b32.xlu0 %v186, 8
    %v189 = vpop.permute.xlu0 %188
    %v191 = vmul.f32 %v158, %v189
    %v192 = vmul.f32 %v159, %v189
    %v193 = vld [vmem:[#allocation6 + $0x8] sm:$0x1]
    %v194 = vlaneseq
    %v195 = vshrl.u32 %v194, 7
    %v196 = vsub.s32 0, %v195
    %v197 = vrot.slane %v193, %v196
    %199 = vrot.lane.b32.xlu0 %v197, 9
    %v200 = vpop.permute.xlu0 %199
    %v202 = vmul.f32 %v158, %v200
    %v203 = vmul.f32 %v159, %v200
    %206 = vrot.lane.b32.xlu0 %v134, 127
    %v207 = vpop.permute.xlu0 %206
    %208 = vrot.lane.b32.xlu0 %v135, 127
    %v209 = vpop.permute.xlu0 %208
    %vm210 = vcmask 1039360
    %v211 = vsel %vm210, %v207, %v209
    %216 = vrot.lane.b32.xlu0 %v145, 126
    %v217 = vpop.permute.xlu0 %216
    %218 = vrot.lane.b32.xlu0 %v146, 126
    %v219 = vpop.permute.xlu0 %218
    %vm220 = vcmask 1031168
    %v221 = vsel %vm220, %v217, %v219
    %226 = vrot.lane.b32.xlu0 %v156, 120
    %v227 = vpop.permute.xlu0 %226
    %228 = vrot.lane.b32.xlu0 %v157, 120
    %v229 = vpop.permute.xlu0 %228
    %vm230 = vcmask 982016
    %v231 = vsel %vm230, %v227, %v229
    %235 = vrot.lane.b32.xlu0 %v113, 119
    %v236 = vpop.permute.xlu0 %235
    %240 = vrot.lane.b32.xlu0 %v169, 118
    %v241 = vpop.permute.xlu0 %240
    %242 = vrot.lane.b32.xlu0 %v170, 118
    %v243 = vpop.permute.xlu0 %242
    %vm244 = vcmask 965632
    %v245 = vsel %vm244, %v241, %v243
    %250 = vrot.lane.b32.xlu0 %v180, 112
    %v251 = vpop.permute.xlu0 %250
    %252 = vrot.lane.b32.xlu0 %v181, 112
    %v253 = vpop.permute.xlu0 %252
    %vm254 = vcmask 916480
    %v255 = vsel %vm254, %v251, %v253
    %260 = vrot.lane.b32.xlu0 %v191, 111
    %v261 = vpop.permute.xlu0 %260
    %262 = vrot.lane.b32.xlu0 %v192, 111
    %v263 = vpop.permute.xlu0 %262
    %vm264 = vcmask 908288
    %v265 = vsel %vm264, %v261, %v263
    %270 = vrot.lane.b32.xlu0 %v202, 110
    %v271 = vpop.permute.xlu0 %270
    %272 = vrot.lane.b32.xlu0 %v203, 110
    %v273 = vpop.permute.xlu0 %272
    %vm274 = vcmask 900096
    %v275 = vsel %vm274, %v271, %v273
    %v278 = vld [vmem:[#allocation8] sm:$0xf]
    %v279 = vpack.c.bf16 %v211, %v123
    %v280 = vpack.c.bf16 %v209, %v124
    %v281 = vpack.c.bf16 %v231, %v221
    %v282 = vpack.c.bf16 %v229, %v219
    %v283 = vpack.c.bf16 %v241, %v236
    %v284 = vpack.c.bf16 %v245, %v236
    %v285 = vpack.c.bf16 %v261, %v251
    %v286 = vpack.c.bf16 %v265, %v255
    %v287 = vpack.c.bf16 %v271, %v271
    %v288 = vpack.c.bf16 %v275, %v275
    %v289 = vld [vmem:[#allocation9] sm:$0xff]
    %291 = vset.pattern.permute.xlu0 0
    %292 = vperm.xlu0 %291, %v289
    %v293 = vpop.permute.xlu0 %292
    %305 = vrot.lane.b32.xlu0 %v279, 9
    %v306 = vpop.permute.xlu0 %305
    %307 = vrot.lane.b32.xlu0 %v280, 9
    %v308 = vpop.permute.xlu0 %307
    %309 = vrot.lane.b32.xlu0 %v281, 9
    %v310 = vpop.permute.xlu0 %309
    %311 = vrot.lane.b32.xlu0 %v282, 9
    %v312 = vpop.permute.xlu0 %311
    %313 = vrot.lane.b32.xlu0 %v283, 9
    %v314 = vpop.permute.xlu0 %313
    %315 = vrot.lane.b32.xlu0 %v284, 9
    %v316 = vpop.permute.xlu0 %315
    %317 = vrot.lane.b32.xlu0 %v285, 9
    %v318 = vpop.permute.xlu0 %317
    %319 = vrot.lane.b32.xlu0 %v286, 9
    %v320 = vpop.permute.xlu0 %319
    %321 = vrot.lane.b32.xlu0 %v287, 9
    %v322 = vpop.permute.xlu0 %321
    %323 = vrot.lane.b32.xlu0 %v288, 9
    %v324 = vpop.permute.xlu0 %323
    %vm325 = vcmask 72704
    %v326 = vsel %vm325, %v306, %v308
    %v327 = vsel %vm325, %v310, %v312
    %v328 = vsel %vm325, %v314, %v316
    %v329 = vsel %vm325, %v318, %v320
    %v330 = vsel %vm325, %v322, %v324
    %vm335 = vcmask 588800
    %v337 = vsel %vm335, %v278, 0
    %vm339 = vcmask 1043456
    %v341 = vsel %vm339, %v330, 0
    %343 = vmatprep.subr.bf16.mxu0 0
    %344 = vmatpush1.bf16.msra.mxu0 %v326
    %345 = vmatprep.subr.bf16.mxu0 0
    %346 = vmatpush1.bf16.msra.mxu0 %v327
    %347 = vmatprep.subr.bf16.mxu0 0
    %348 = vmatpush1.bf16.msra.mxu0 %v328
    %349 = vmatprep.subr.bf16.mxu0 0
    %350 = vmatpush1.bf16.msra.mxu0 %v329
    %351 = vmatprep.subr.bf16.mxu0 0
    %352 = vmatpush1.bf16.msra.mxu0 %v341
    %353 = vmatprep.subr.bf16.mxu0 0
    %354 = vmatpush1.bf16.msra.mxu0 0
    %355 = vmatprep.subr.bf16.mxu0 0
    %356 = vmatpush1.bf16.msra.mxu0 0
    %357 = vmatprep.subr.bf16.mxu0 0
    %358 = vmatpush1.bf16.msra.mxu0 0
    %359 = vmatprep.subr.bf16.mxu0 0
    %360 = vmatpush1.bf16.msra.mxu0 0
    %361 = vmatprep.subr.bf16.mxu0 0
    %362 = vmatpush1.bf16.msra.mxu0 0
    %363 = vmatprep.subr.bf16.mxu0 0
    %364 = vmatpush1.bf16.msra.mxu0 0
    %365 = vmatprep.subr.bf16.mxu0 0
    %366 = vmatpush1.bf16.msra.mxu0 0
    %367 = vmatprep.subr.bf16.mxu0 0
    %368 = vmatpush1.bf16.msra.mxu0 0
    %369 = vmatprep.subr.bf16.mxu0 0
    %370 = vmatpush1.bf16.msra.mxu0 0
    %371 = vmatprep.subr.bf16.mxu0 0
    %372 = vmatpush1.bf16.msra.mxu0 0
    %373 = vmatprep.subr.bf16.mxu0 0
    %374 = vmatpush1.bf16.msra.mxu0 0
    %375 = vmatprep.mubr.bf16.mxu0 0
    %376 = vmatmul.mubr.bf16.gmra.mrb[0].mxu0 %v337
    %v377 = vpop.f32.mrb[0].mxu0
    %v378 = vadd.f32 %v293, %v377
    %v379 = vpop.f32.mrb[0].mxu0
    %v380 = vpop.f32.mrb[0].mxu0
    %v381 = vpop.f32.mrb[0].mxu0
    %382 = vdwg.mxu0
    %vm383 = vcmp.ge.f32.partialorder %v378, 0.0
    %v384 = vmul.f32 %v378, 0.1
    %v385 = vsel %vm383, %v378, %v384
    %386 = vst [vmem:[#allocation2 + $0x8] sm:$0xff] %v385
    %v387 = vld [vmem:[#allocation2] sm:$0xff]
    %v388 = vld [vmem:[#allocation2 + $0x8] sm:$0xff]
    %v389 = vld [vmem:[#allocation6] sm:$0x1]
    %v390 = vlaneseq
    %v391 = vshrl.u32 %v390, 7
    %v392 = vsub.s32 0, %v391
    %v393 = vrot.slane %v389, %v392
    %395 = vrot.lane.b32.xlu0 %v393, 119
    %v396 = vpop.permute.xlu0 %395
    %v398 = vmul.f32 %v387, %v396
    %v399 = vmul.f32 %v388, %v396
    %v400 = vld [vmem:[#allocation6 + $0x1] sm:$0x1]
    %v401 = vlaneseq
    %v402 = vshrl.u32 %v401, 7
    %v403 = vsub.s32 0, %v402
    %v404 = vrot.slane %v400, %v403
    %406 = vrot.lane.b32.xlu0 %v404, 120
    %v407 = vpop.permute.xlu0 %406
    %v409 = vmul.f32 %v387, %v407
    %v410 = vmul.f32 %v388, %v407
    %v411 = vld [vmem:[#allocation6 + $0x2] sm:$0x1]
    %v412 = vlaneseq
    %v413 = vshrl.u32 %v412, 7
    %v414 = vsub.s32 0, %v413
    %v415 = vrot.slane %v411, %v414
    %417 = vrot.lane.b32.xlu0 %v415, 121
    %v418 = vpop.permute.xlu0 %417
    %v420 = vmul.f32 %v387, %v418
    %v421 = vmul.f32 %v388, %v418
    %v422 = vld [vmem:[#allocation6 + $0x3] sm:$0x1]
    %v423 = vlaneseq
    %v424 = vshrl.u32 %v423, 7
    %v425 = vsub.s32 0, %v424
    %v426 = vrot.slane %v422, %v425
    %428 = vrot.lane.b32.xlu0 %v426, 127
    %v429 = vpop.permute.xlu0 %428
    %v431 = vmul.f32 %v387, %v429
    %v432 = vmul.f32 %v388, %v429
    %v433 = vld [vmem:[#allocation2 + $0x8] sm:$0xff]
    %v434 = vld [vmem:[#allocation2 + $0x10] sm:$0xff]
    %v435 = vld [vmem:[#allocation6 + $0x5] sm:$0x1]
    %v436 = vlaneseq
    %v437 = vshrl.u32 %v436, 7
    %v438 = vsub.s32 0, %v437
    %v439 = vrot.slane %v435, %v438
    %441 = vrot.lane.b32.xlu0 %v439, 1
    %v442 = vpop.permute.xlu0 %441
    %v444 = vmul.f32 %v433, %v442
    %v445 = vmul.f32 %v434, %v442
    %v446 = vld [vmem:[#allocation6 + $0x6] sm:$0x1]
    %v447 = vlaneseq
    %v448 = vshrl.u32 %v447, 7
    %v449 = vsub.s32 0, %v448
    %v450 = vrot.slane %v446, %v449
    %452 = vrot.lane.b32.xlu0 %v450, 7
    %v453 = vpop.permute.xlu0 %452
    %v455 = vmul.f32 %v433, %v453
    %v456 = vmul.f32 %v434, %v453
    %v457 = vld [vmem:[#allocation6 + $0x7] sm:$0x1]
    %v458 = vlaneseq
    %v459 = vshrl.u32 %v458, 7
    %v460 = vsub.s32 0, %v459
    %v461 = vrot.slane %v457, %v460
    %463 = vrot.lane.b32.xlu0 %v461, 8
    %v464 = vpop.permute.xlu0 %463
    %v466 = vmul.f32 %v433, %v464
    %v467 = vmul.f32 %v434, %v464
    %v468 = vld [vmem:[#allocation6 + $0x8] sm:$0x1]
    %v469 = vlaneseq
    %v470 = vshrl.u32 %v469, 7
    %v471 = vsub.s32 0, %v470
    %v472 = vrot.slane %v468, %v471
    %474 = vrot.lane.b32.xlu0 %v472, 9
    %v475 = vpop.permute.xlu0 %474
    %v477 = vmul.f32 %v433, %v475
    %v478 = vmul.f32 %v434, %v475
    %481 = vrot.lane.b32.xlu0 %v409, 127
    %v482 = vpop.permute.xlu0 %481
    %483 = vrot.lane.b32.xlu0 %v410, 127
    %v484 = vpop.permute.xlu0 %483
    %v485 = vsel %vm210, %v482, %v484
    %490 = vrot.lane.b32.xlu0 %v420, 126
    %v491 = vpop.permute.xlu0 %490
    %492 = vrot.lane.b32.xlu0 %v421, 126
    %v493 = vpop.permute.xlu0 %492
    %v494 = vsel %vm220, %v491, %v493
    %499 = vrot.lane.b32.xlu0 %v431, 120
    %v500 = vpop.permute.xlu0 %499
    %501 = vrot.lane.b32.xlu0 %v432, 120
    %v502 = vpop.permute.xlu0 %501
    %v503 = vsel %vm230, %v500, %v502
    %507 = vrot.lane.b32.xlu0 %v388, 119
    %v508 = vpop.permute.xlu0 %507
    %512 = vrot.lane.b32.xlu0 %v444, 118
    %v513 = vpop.permute.xlu0 %512
    %514 = vrot.lane.b32.xlu0 %v445, 118
    %v515 = vpop.permute.xlu0 %514
    %v516 = vsel %vm244, %v513, %v515
    %521 = vrot.lane.b32.xlu0 %v455, 112
    %v522 = vpop.permute.xlu0 %521
    %523 = vrot.lane.b32.xlu0 %v456, 112
    %v524 = vpop.permute.xlu0 %523
    %v525 = vsel %vm254, %v522, %v524
    %530 = vrot.lane.b32.xlu0 %v466, 111
    %v531 = vpop.permute.xlu0 %530
    %532 = vrot.lane.b32.xlu0 %v467, 111
    %v533 = vpop.permute.xlu0 %532
    %v534 = vsel %vm264, %v531, %v533
    %539 = vrot.lane.b32.xlu0 %v477, 110
    %v540 = vpop.permute.xlu0 %539
    %541 = vrot.lane.b32.xlu0 %v478, 110
    %v542 = vpop.permute.xlu0 %541
    %v543 = vsel %vm274, %v540, %v542
    %v546 = vld [vmem:[#allocation11] sm:$0xf]
    %v547 = vpack.c.bf16 %v485, %v398
    %v548 = vpack.c.bf16 %v484, %v399
    %v549 = vpack.c.bf16 %v503, %v494
    %v550 = vpack.c.bf16 %v502, %v493
    %v551 = vpack.c.bf16 %v513, %v508
    %v552 = vpack.c.bf16 %v516, %v508
    %v553 = vpack.c.bf16 %v531, %v522
    %v554 = vpack.c.bf16 %v534, %v525
    %v555 = vpack.c.bf16 %v540, %v540
    %v556 = vpack.c.bf16 %v543, %v543
    %v557 = vld [vmem:[#allocation12] sm:$0xff]
    %559 = vset.pattern.permute.xlu0 0
    %560 = vperm.xlu0 %559, %v557
    %v561 = vpop.permute.xlu0 %560
    %573 = vrot.lane.b32.xlu0 %v547, 9
    %v574 = vpop.permute.xlu0 %573
    %575 = vrot.lane.b32.xlu0 %v548, 9
    %v576 = vpop.permute.xlu0 %575
    %577 = vrot.lane.b32.xlu0 %v549, 9
    %v578 = vpop.permute.xlu0 %577
    %579 = vrot.lane.b32.xlu0 %v550, 9
    %v580 = vpop.permute.xlu0 %579
    %581 = vrot.lane.b32.xlu0 %v551, 9
    %v582 = vpop.permute.xlu0 %581
    %583 = vrot.lane.b32.xlu0 %v552, 9
    %v584 = vpop.permute.xlu0 %583
    %585 = vrot.lane.b32.xlu0 %v553, 9
    %v586 = vpop.permute.xlu0 %585
    %587 = vrot.lane.b32.xlu0 %v554, 9
    %v588 = vpop.permute.xlu0 %587
    %589 = vrot.lane.b32.xlu0 %v555, 9
    %v590 = vpop.permute.xlu0 %589
    %591 = vrot.lane.b32.xlu0 %v556, 9
    %v592 = vpop.permute.xlu0 %591
    %v593 = vsel %vm325, %v574, %v576
    %v594 = vsel %vm325, %v578, %v580
    %v595 = vsel %vm325, %v582, %v584
    %v596 = vsel %vm325, %v586, %v588
    %v597 = vsel %vm325, %v590, %v592
    %v603 = vsel %vm335, %v546, 0
    %v606 = vsel %vm339, %v597, 0
    %608 = vmatprep.subr.bf16.mxu0 0
    %609 = vmatpush1.bf16.msra.mxu0 %v593
    %610 = vmatprep.subr.bf16.mxu0 0
    %611 = vmatpush1.bf16.msra.mxu0 %v594
    %612 = vmatprep.subr.bf16.mxu0 0
    %613 = vmatpush1.bf16.msra.mxu0 %v595
    %614 = vmatprep.subr.bf16.mxu0 0
    %615 = vmatpush1.bf16.msra.mxu0 %v596
    %616 = vmatprep.subr.bf16.mxu0 0
    %617 = vmatpush1.bf16.msra.mxu0 %v606
    %618 = vmatprep.subr.bf16.mxu0 0
    %619 = vmatpush1.bf16.msra.mxu0 0
    %620 = vmatprep.subr.bf16.mxu0 0
    %621 = vmatpush1.bf16.msra.mxu0 0
    %622 = vmatprep.subr.bf16.mxu0 0
    %623 = vmatpush1.bf16.msra.mxu0 0
    %624 = vmatprep.subr.bf16.mxu0 0
    %625 = vmatpush1.bf16.msra.mxu0 0
    %626 = vmatprep.subr.bf16.mxu0 0
    %627 = vmatpush1.bf16.msra.mxu0 0
    %628 = vmatprep.subr.bf16.mxu0 0
    %629 = vmatpush1.bf16.msra.mxu0 0
    %630 = vmatprep.subr.bf16.mxu0 0
    %631 = vmatpush1.bf16.msra.mxu0 0
    %632 = vmatprep.subr.bf16.mxu0 0
    %633 = vmatpush1.bf16.msra.mxu0 0
    %634 = vmatprep.subr.bf16.mxu0 0
    %635 = vmatpush1.bf16.msra.mxu0 0
    %636 = vmatprep.subr.bf16.mxu0 0
    %637 = vmatpush1.bf16.msra.mxu0 0
    %638 = vmatprep.subr.bf16.mxu0 0
    %639 = vmatpush1.bf16.msra.mxu0 0
    %640 = vmatprep.mubr.bf16.mxu0 0
    %641 = vmatmul.mubr.bf16.gmra.mrb[0].mxu0 %v603
    %v642 = vpop.f32.mrb[0].mxu0
    %v643 = vadd.f32 %v561, %v642
    %v644 = vpop.f32.mrb[0].mxu0
    %v645 = vpop.f32.mrb[0].mxu0
    %v646 = vpop.f32.mrb[0].mxu0
    %647 = vdwg.mxu0
    %vm648 = vcmp.ge.f32.partialorder %v643, 0.0
    %v649 = vmul.f32 %v643, 0.1
    %v650 = vsel %vm648, %v643, %v649
    %651 = vst [vmem:[#allocation14] sm:$0xff] %v650
    // Predicated region
    $region50: #{tpu_custom_call.1} parent=1 // pred_check
      _
    $region51: #{tpu_custom_call.1} parent=1 // pred_check_branch
      %653 = sbr.rel (0) target = $region53
    $region52: #{tpu_custom_call.1} parent=1 // pred_region
      %s655 = ssub.s32 128, 128
      %656 = vsyncadd [#allocation5], %s655
      %s658 = sshll.u32 [#allocation14], 4
      %s659 = int_to_ptr.vmem [resolvable:$true] %s658
      %661 = dma.vmem_to_hbm [thread:$0]  %s659, 128, %s6, [#allocation5]
    $region53: #{tpu_custom_call.1} parent=1 // pred_fallthru
      _
    // Predicated region
    $region54: #{tpu_custom_call.1} parent=1 // pred_check
      _
    $region55: #{tpu_custom_call.1} parent=1 // pred_check_branch
      %663 = sbr.rel (0) target = $region57
    $region56: #{tpu_custom_call.1} parent=1 // pred_region
      %664 = dma.done [#allocation5], 128
    $region57: #{tpu_custom_call.1} parent=1 // pred_fallthru
      _
    %665 = vsyncpa [#allocation4], 1
    %666 = vsyncpa [#allocation7], 1
    %667 = vsyncpa [#allocation10], 1
    %668 = vsyncpa [#allocation13], 1
    %669 = vsyncpa [#allocation5], 1

</llo_original>
